<compile_context>
chip_gen: v7x
topology: tpu7x:2x2x1
jax: 0.10.0
libtpu: 0.0.40
codegen_flags: <defaults>
</compile_context>

<pallas_src>
import functools
import math

import jax
import jax.numpy as jnp
from jax.experimental import pallas as pl
from jax.experimental.pallas import tpu as pltpu


def _round_up(x, m):
    return (x + m - 1) // m * m


def _vmem_capacity_bytes():
    try:
        info = pltpu.get_tpu_info()
        cap = int(getattr(info, "vmem_capacity_bytes", 0))
        if cap > 0:
            return cap
    except Exception:
        pass
    return 64 * 1024 * 1024  # conservative (v7x-sized) fallback


def _resident_spec(shape):
    """Constant-index (VMEM-resident) BlockSpec; single-buffered when supported.

    Returns (spec, buffer_factor) where buffer_factor is the multiplier to use
    when budgeting the resident VMEM footprint.
    """
    idx_map = lambda *_: (0,) * len(shape)
    try:
        return pl.BlockSpec(shape, idx_map, pipeline_mode=pl.Buffered(1)), 1
    except (TypeError, AttributeError):
        return pl.BlockSpec(shape, idx_map), 2


# ---------------------------------------------------------------------------
# Pallas kernel: (optional) pooler + classifier MLP head, one batch tile/step.
# refs = (cls_tile, [wp], w_0..w_{n_hidden-1}, w_final, biases_packed, out)
# ---------------------------------------------------------------------------
def head_kernel(*refs, pooling, n_hidden):
    idx = 0
    x_ref = refs[idx]; idx += 1
    wp_ref = None
    if pooling:
        wp_ref = refs[idx]; idx += 1
    w_refs = refs[idx:idx + n_hidden]; idx += n_hidden
    wfin_ref = refs[idx]; idx += 1
    b_ref = refs[idx]; idx += 1
    out_ref = refs[idx]

    x = x_ref[...]                                       # [TB, H] bf16 stream
    bias_row = 0

    def linear_tanh(x, w_ref, bias_row):
        out_dim = w_ref.shape[1]
        # bf16 operands on the MXU, f32 accumulation; bias add + tanh in f32
        # (safe on v5e, which has no bf16 VPU/EUP).
        h = jnp.dot(x.astype(jnp.bfloat16), w_ref[...],
                    preferred_element_type=jnp.float32)
        h = h + b_ref[bias_row:bias_row + 1, :out_dim]
        return jnp.tanh(h)

    if pooling:                                          # pooler: Linear + Tanh
        x = linear_tanh(x, wp_ref, bias_row)
        bias_row += 1

    for li in range(n_hidden):                           # hidden Linear + act
        x = linear_tanh(x, w_refs[li], bias_row)
        bias_row += 1

    # Final Linear(fc_last, 1): VPU multiply + cross-lane (XLU) reduction —
    # frees the MXU push slot — then a compact [TB, 1] f32 store (4 B/row of
    # HBM writeback instead of a broadcast lane slab).
    w_fin = wfin_ref[...]                                # [1, fc_last] f32
    z = jnp.sum(x.astype(jnp.float32) * w_fin, axis=-1, keepdims=True)
    z = z + b_ref[bias_row:bias_row + 1, 0:1]
    out_ref[...] = z                                     # [TB, 1] f32


# ---------------------------------------------------------------------------
# Wrapper: builds grid / BlockSpecs and calls the kernel.
# ---------------------------------------------------------------------------
def sentence_pair_head(sequence_output, pooler_params, hidden_params,
                       final_params, *, pooling):
    # sequence_output is seq-major [S, B, H]; only the CLS slab (seq pos 0)
    # is streamed into VMEM — the rest of the array is never touched.
    S, B, H = sequence_output.shape
    wp, bp = pooler_params
    w_fin, b_fin = final_params

    # Skip the pooler weight/bias DMA entirely when pooling=False.
    matmul_ws = ([wp] if pooling else []) + [w for (w, _) in hidden_params]
    bias_list = ([bp] if pooling else []) + [b for (_, b) in hidden_params] \
        + [b_fin]

    # Pack all biases into one f32 [n_bias, D_pad] ref (one DMA).
    d_pad = _round_up(max(int(b.shape[-1]) for b in bias_list), 128)
    b_packed = jnp.stack(
        [jnp.pad(b.astype(jnp.float32).reshape(-1),
                 (0, d_pad - int(b.shape[-1]))) for b in bias_list], axis=0)

    # VMEM-resident operands (constant block index, single-buffered).
    resident = []
    buf_factor = 1
    for w in matmul_ws + [w_fin, b_packed]:
        spec, f = _resident_spec(w.shape)
        resident.append((w, spec))
        buf_factor = max(buf_factor, f)
    resident_bytes = sum(int(w.size) * w.dtype.itemsize for w, _ in resident)

    # ---- generation-aware batch-tile sizing --------------------------------
    vmem_cap = _vmem_capacity_bytes()
    usable = int(0.70 * vmem_cap)                # tile budget (leaves headroom)
    widths = [H] + [int(w.shape[1]) for w in matmul_ws]
    max_width = max(widths)
    in_itemsize = sequence_output.dtype.itemsize
    per_row = (2 * H * in_itemsize               # double-buffered bf16 input tile
               + 2 * 512                         # (tb,1) f32 out tile, lane-padded, 2 bufs
               + 10 * max_width)                 # live f32 + bf16-cast activations
    tb = max(8, (usable - buf_factor * resident_bytes) // per_row)
    tb = int(min(tb, 1024 if vmem_cap >= 96 * 1024 * 1024 else 512))
    if B >= 16:
        # Guarantee >= 2 grid steps so ("parallel",) shards across v7x's 2 TCs.
        tb = min(tb, _round_up(pl.cdiv(B, 2), 8))
    if tb >= B:
        tb = B
    else:
        tb = max(8, (tb // 8) * 8)
    num_tiles = pl.cdiv(B, tb)

    inputs = [sequence_output] + [w for w, _ in resident]
    in_specs = [pl.BlockSpec((None, tb, H), lambda i: (0, i, 0))]
    in_specs += [spec for _, spec in resident]
    out_specs = pl.BlockSpec((tb, 1), lambda i: (i, 0))

    flops = 2 * B * sum(int(w.shape[0]) * int(w.shape[1]) for w in matmul_ws)
    flops += 2 * B * int(w_fin.shape[1])
    transcendentals = B * sum(int(w.shape[1]) for w in matmul_ws)
    bytes_accessed = (B * H * in_itemsize + resident_bytes + B * 4)

    est_vmem = buf_factor * resident_bytes + tb * per_row + (1 << 20)
    vmem_limit = int(min(int(0.875 * vmem_cap),
                         max(32 * 1024 * 1024, est_vmem + est_vmem // 4)))

    kernel = functools.partial(head_kernel, pooling=pooling,
                               n_hidden=len(hidden_params))
    out = pl.pallas_call(
        kernel,
        out_shape=jax.ShapeDtypeStruct((B, 1), jnp.float32),
        grid_spec=pltpu.PrefetchScalarGridSpec(
            num_scalar_prefetch=0,
            grid=(num_tiles,),
            in_specs=in_specs,
            out_specs=out_specs),
        compiler_params=pltpu.CompilerParams(
            dimension_semantics=("parallel",),
            vmem_limit_bytes=vmem_limit),
        cost_estimate=pl.CostEstimate(flops=flops,
                                      transcendentals=transcendentals,
                                      bytes_accessed=bytes_accessed),
    )(*inputs)
    return out[:, 0]                                     # .squeeze(-1)


# ---------------------------------------------------------------------------
# Plain-JAX glue: attention mask, synthetic backbone, parameter init.
# ---------------------------------------------------------------------------
def gen_attention_mask(token_ids, valid_length):
    S = token_ids.shape[1]
    pos = jnp.arange(S, dtype=jnp.int32)[None, :]
    return (pos < valid_length[:, None]).astype(jnp.float32)


def synthetic_backbone(token_ids, segment_ids, attention_mask, tok_emb, seg_emb):
    # Deterministic stand-in producing seq-major sequence_output [S, B, H] in
    # bf16 so the Pallas head streams half the bytes and needs no cast.
    tt = token_ids.T                                     # [S, B]
    st = segment_ids.T
    seq = tok_emb[tt] + seg_emb[st]                      # bf16 [S, B, H]
    return seq * attention_mask.T[..., None].astype(seq.dtype)


def init_params(key, hidden_size, fc_layers, vocab_size, n_segments):
    keys = jax.random.split(key, 8 + 2 * len(fc_layers))
    ki = iter(keys)

    tok_emb = (0.02 * jax.random.normal(next(ki), (vocab_size, hidden_size),
                                        dtype=jnp.float32)).astype(jnp.bfloat16)
    seg_emb = (0.02 * jax.random.normal(next(ki), (n_segments, hidden_size),
                                        dtype=jnp.float32)).astype(jnp.bfloat16)

    # pooler: Linear(H, H), xavier_uniform weight, stored pre-transposed
    # [in, out] in bf16 (MXU operand dtype; half the weight DMA bytes).
    lim = math.sqrt(6.0 / (hidden_size + hidden_size))
    wp = jax.random.uniform(next(ki), (hidden_size, hidden_size),
                            minval=-lim, maxval=lim,
                            dtype=jnp.float32).astype(jnp.bfloat16)
    bound = 1.0 / math.sqrt(hidden_size)
    bp = jax.random.uniform(next(ki), (hidden_size,), minval=-bound,
                            maxval=bound, dtype=jnp.float32)

    # classifier: dims = [H] + fc_layers + [1].
    dims = [hidden_size] + list(fc_layers) + [1]
    hidden_params = []
    for in_dim, out_dim in zip(dims[:-2], dims[1:-1]):
        b_ = 1.0 / math.sqrt(in_dim)
        w = jax.random.uniform(next(ki), (in_dim, out_dim), minval=-b_,
                               maxval=b_, dtype=jnp.float32).astype(jnp.bfloat16)
        b = jax.random.uniform(next(ki), (out_dim,), minval=-b_, maxval=b_,
                               dtype=jnp.float32)
        hidden_params.append((w, b))

    # final Linear(fc_last, 1): lane-dense f32 row [1, fc_last] (VPU path).
    in_dim = dims[-2]
    b_ = 1.0 / math.sqrt(in_dim)
    w_fin = jax.random.uniform(next(ki), (1, in_dim), minval=-b_, maxval=b_,
                               dtype=jnp.float32)
    b_fin = jax.random.uniform(next(ki), (1,), minval=-b_, maxval=b_,
                               dtype=jnp.float32)

    return tok_emb, seg_emb, (wp, bp), hidden_params, (w_fin, b_fin)


def reference_head(pooled, pooler_params, hidden_params, final_params, *,
                   pooling):
    x = pooled
    if pooling:
        wp, bp = pooler_params
        x = jnp.tanh(jnp.dot(x.astype(jnp.bfloat16), wp,
                             preferred_element_type=jnp.float32) + bp)
    for w, b in hidden_params:
        x = jnp.tanh(jnp.dot(x.astype(jnp.bfloat16), w,
                             preferred_element_type=jnp.float32) + b)
    w_fin, b_fin = final_params
    return jnp.sum(x.astype(jnp.float32) * w_fin, axis=-1) + b_fin[0]


def sentence_pair_forward(token_ids, valid_length, segment_ids, params,
                          pooling=False):
    tok_emb, seg_emb, pooler_params, hidden_params, final_params = params
    attention_mask = gen_attention_mask(token_ids, valid_length)
    sequence_output = synthetic_backbone(token_ids, segment_ids,
                                         attention_mask, tok_emb, seg_emb)
    # CLS extraction is fused into the kernel: the head streams only the
    # seq-position-0 slab of [S, B, H] (no pooled [B, H] HBM intermediate).
    # dropout=0.0 -> no dropout layer in the PyTorch module.
    cls_out = sentence_pair_head(sequence_output, pooler_params, hidden_params,
                                 final_params, pooling=pooling)
    pooled_output = sequence_output[0]                   # [B, H] (testing only)
    return {"cls_out": cls_out}, pooled_output


# ---------------------------------------------------------------------------
if __name__ == "__main__":
    vocab_size, n_segments = 64, 2
    H = 128
    fc_layers = [128]

    key = jax.random.PRNGKey(0)
    # (B=8, S=8): single tile; (B=24, S=16): 2 grid steps + partial last tile.
    for (B, S) in ((8, 8), (24, 16)):
        k_tok, k_seg, k_len, k_par, key = jax.random.split(key, 5)
        token_ids = jax.random.randint(k_tok, (B, S), 0, vocab_size,
                                       dtype=jnp.int32)
        segment_ids = jax.random.randint(k_seg, (B, S), 0, n_segments,
                                         dtype=jnp.int32)
        valid_length = jax.random.randint(k_len, (B,), 1, S + 1,
                                          dtype=jnp.int32)
        params = init_params(k_par, H, fc_layers, vocab_size, n_segments)

        for pooling in (True, False):
            ret, pooled = sentence_pair_forward(token_ids, valid_length,
                                                segment_ids, params,
                                                pooling=pooling)
            cls_out = jax.block_until_ready(ret["cls_out"])
            ref = reference_head(pooled, params[2], params[3], params[4],
                                 pooling=pooling)
            assert cls_out.shape == (B,)
            assert jnp.allclose(cls_out, ref, atol=1e-3, rtol=1e-3), \
                (B, pooling)

    print("KERNEL_OK")
</pallas_src>

<mosaic_0001>
module attributes {stable_mosaic.version = 11 : i64} {
  func.func @head_kernel(%arg0: i32, %arg1: memref<1x8x128xbf16, #tpu.memory_space<vmem>>, %arg2: memref<128x128xbf16, #tpu.memory_space<vmem>>, %arg3: memref<128x128xbf16, #tpu.memory_space<vmem>>, %arg4: memref<1x128xf32, #tpu.memory_space<vmem>>, %arg5: memref<3x128xf32, #tpu.memory_space<vmem>>, %arg6: memref<8x1xf32, #tpu.memory_space<vmem>>) attributes {dimension_semantics = [#tpu.dimension_semantics<parallel>], iteration_bounds = array<i64: 1>, scalar_prefetch = 0 : i64, scratch_operands = 0 : i64, tpu.core_type = #tpu.core_type<tc>, window_params = [{transform_indices = @transform_0, window_bounds = array<i64: 1, 8, 128>}, {pipeline_mode = #tpu.pipeline_mode<synchronous>, transform_indices = @transform_1, window_bounds = array<i64: 128, 128>}, {pipeline_mode = #tpu.pipeline_mode<synchronous>, transform_indices = @transform_2, window_bounds = array<i64: 128, 128>}, {pipeline_mode = #tpu.pipeline_mode<synchronous>, transform_indices = @transform_3, window_bounds = array<i64: 1, 128>}, {pipeline_mode = #tpu.pipeline_mode<synchronous>, transform_indices = @transform_4, window_bounds = array<i64: 3, 128>}, {transform_indices = @transform_5, window_bounds = array<i64: 8, 1>}]} {
    %c0 = arith.constant 0 : index
    %c0_0 = arith.constant 0 : index
    %c0_1 = arith.constant 0 : index
    %0 = vector.load %arg1[%c0, %c0_0, %c0_1] : memref<1x8x128xbf16, #tpu.memory_space<vmem>>, vector<1x8x128xbf16>
    %1 = vector.shape_cast %0 : vector<1x8x128xbf16> to vector<8x128xbf16>
    %c0_2 = arith.constant 0 : index
    %c0_3 = arith.constant 0 : index
    %2 = vector.load %arg2[%c0_2, %c0_3] : memref<128x128xbf16, #tpu.memory_space<vmem>>, vector<128x128xbf16>
    %cst = arith.constant dense<0.000000e+00> : vector<8x128xf32>
    %3 = tpu.matmul %1, %2, %cst {dimension_numbers = #tpu.dot_dimension_numbers<[1], [0], [0], [1], [0, 0, 1, 1], [], []>} : vector<8x128xbf16>, vector<128x128xbf16>, vector<8x128xf32> -> vector<8x128xf32>
    %c0_4 = arith.constant 0 : index
    %c0_5 = arith.constant 0 : index
    %4 = vector.load %arg5[%c0_4, %c0_5] : memref<3x128xf32, #tpu.memory_space<vmem>>, vector<1x128xf32>
    %5 = vector.broadcast %4 : vector<1x128xf32> to vector<8x128xf32>
    %6 = arith.addf %3, %5 : vector<8x128xf32>
    %7 = math.tanh %6 : vector<8x128xf32>
    %8 = arith.truncf %7 : vector<8x128xf32> to vector<8x128xbf16>
    %c0_6 = arith.constant 0 : index
    %c0_7 = arith.constant 0 : index
    %9 = vector.load %arg3[%c0_6, %c0_7] : memref<128x128xbf16, #tpu.memory_space<vmem>>, vector<128x128xbf16>
    %cst_8 = arith.constant dense<0.000000e+00> : vector<8x128xf32>
    %10 = tpu.matmul %8, %9, %cst_8 {dimension_numbers = #tpu.dot_dimension_numbers<[1], [0], [0], [1], [0, 0, 1, 1], [], []>} : vector<8x128xbf16>, vector<128x128xbf16>, vector<8x128xf32> -> vector<8x128xf32>
    %c1 = arith.constant 1 : index
    %c0_9 = arith.constant 0 : index
    %11 = vector.load %arg5[%c1, %c0_9] : memref<3x128xf32, #tpu.memory_space<vmem>>, vector<1x128xf32>
    %12 = vector.broadcast %11 : vector<1x128xf32> to vector<8x128xf32>
    %13 = arith.addf %10, %12 : vector<8x128xf32>
    %14 = math.tanh %13 : vector<8x128xf32>
    %c0_10 = arith.constant 0 : index
    %c0_11 = arith.constant 0 : index
    %15 = vector.load %arg4[%c0_10, %c0_11] : memref<1x128xf32, #tpu.memory_space<vmem>>, vector<1x128xf32>
    %16 = vector.broadcast %15 : vector<1x128xf32> to vector<8x128xf32>
    %17 = arith.mulf %14, %16 : vector<8x128xf32>
    %cst_12 = arith.constant dense<0.000000e+00> : vector<8xf32>
    %18 = vector.multi_reduction <add>, %17, %cst_12 [1] : vector<8x128xf32> to vector<8xf32>
    %19 = vector.shape_cast %18 : vector<8xf32> to vector<8x1xf32>
    %c2 = arith.constant 2 : index
    %c0_13 = arith.constant 0 : index
    %20 = vector.load %arg5[%c2, %c0_13] : memref<3x128xf32, #tpu.memory_space<vmem>>, vector<1x1xf32>
    %21 = vector.broadcast %20 : vector<1x1xf32> to vector<8x1xf32>
    %22 = arith.addf %19, %21 : vector<8x1xf32>
    %c0_14 = arith.constant 0 : index
    %c0_15 = arith.constant 0 : index
    %23 = vector.load %arg6[%c0_14, %c0_15] : memref<8x1xf32, #tpu.memory_space<vmem>>, vector<8x1xf32>
    tpu.vector_store %arg6[%c0_14, %c0_15], %22 {strides = array<i32>} : memref<8x1xf32, #tpu.memory_space<vmem>>, vector<8x1xf32>,
    return
  }
  func.func @transform_0(%arg0: i32) -> (i32, i32, i32) {
    %c0_i32 = arith.constant 0 : i32
    %c0_i32_0 = arith.constant 0 : i32
    %c0_i32_1 = arith.constant 0 : i32
    return %c0_i32, %arg0, %c0_i32_0 : i32, i32, i32
  }
  func.func @transform_1(%arg0: i32) -> (i32, i32) {
    %c0_i32 = arith.constant 0 : i32
    %c0_i32_0 = arith.constant 0 : i32
    %c0_i32_1 = arith.constant 0 : i32
    return %c0_i32, %c0_i32_0 : i32, i32
  }
  func.func @transform_2(%arg0: i32) -> (i32, i32) {
    %c0_i32 = arith.constant 0 : i32
    %c0_i32_0 = arith.constant 0 : i32
    %c0_i32_1 = arith.constant 0 : i32
    return %c0_i32, %c0_i32_0 : i32, i32
  }
  func.func @transform_3(%arg0: i32) -> (i32, i32) {
    %c0_i32 = arith.constant 0 : i32
    %c0_i32_0 = arith.constant 0 : i32
    %c0_i32_1 = arith.constant 0 : i32
    return %c0_i32, %c0_i32_0 : i32, i32
  }
  func.func @transform_4(%arg0: i32) -> (i32, i32) {
    %c0_i32 = arith.constant 0 : i32
    %c0_i32_0 = arith.constant 0 : i32
    %c0_i32_1 = arith.constant 0 : i32
    return %c0_i32, %c0_i32_0 : i32, i32
  }
  func.func @transform_5(%arg0: i32) -> (i32, i32) {
    %c0_i32 = arith.constant 0 : i32
    %c0_i32_0 = arith.constant 0 : i32
    return %arg0, %c0_i32 : i32, i32
  }
}

</mosaic_0001>

<llo_original>
// kernel: tpu_custom_call.1
$region0: #{tpu_custom_call.1}
  #allocation0 [shape = 'u32[]', space=smem, size = 0x4, offset = 0x4, fixed_abs, tag = 'smem constant byte address 0x4 - core index']
  #allocation1 [shape = 'u32[144,128]{1,0:T(1,128)}', space=vmem, size = 0x12000, scoped, tag = 'internal scratch']
  %s0 = inlined_call_operand.hbm [shape: bf16[8,8,128], index: 0, kind: input, shape index: {}]
  %s1 = inlined_call_operand.hbm [shape: bf16[128,128], index: 1, kind: input, shape index: {}]
  %s2 = inlined_call_operand.hbm [shape: bf16[128,128], index: 2, kind: input, shape index: {}]
  %s3 = inlined_call_operand.vmem [shape: f32[1,128], index: 3, kind: input, shape index: {}]
  %s4 = inlined_call_operand.vmem [shape: f32[3,128], index: 4, kind: input, shape index: {}]
  %s5 = inlined_call_operand.vmem [shape: f32[8,1], index: 5, kind: output, shape index: {}]
  %s6 = sld [smem:[#allocation0]]
  $region42: #{tpu_custom_call.1} parent=0
    _
  %s8 = ssub.s32 1, %s6
  %s9 = scalar_select 0, %s8, %s6
  $region1: #{tpu_custom_call.1} parent=0
    #allocation2 [shape = 'u8[2048]{0}', space=vmem, size = 0x800, scoped, tag = 'input window, operand 0, single buffered']
    #allocation3 [shape = 's32[1]{0}', space=sflag, size = 0x4, scoped, tag = 'scoped memory for tpu_custom_call.1']
    #allocation4 [shape = 'u8[32768]{0}', space=vmem, size = 0x8000, scoped, tag = 'input window, operand 1, single buffered']
    #allocation5 [shape = 's32[1]{0}', space=sflag, size = 0x4, scoped, tag = 'scoped memory for tpu_custom_call.1']
    #allocation6 [shape = 'u8[32768]{0}', space=vmem, size = 0x8000, scoped, tag = 'input window, operand 2, single buffered']
    %10 = vsyncpa [#allocation3], 0
    %11 = vsyncpa [#allocation5], 0
    // Predicated region
    $region2: #{tpu_custom_call.1} parent=1 // pred_check
      _
    $region3: #{tpu_custom_call.1} parent=1 // pred_check_branch
      %13 = sbr.rel (0) target = $region5
    $region4: #{tpu_custom_call.1} parent=1 // pred_region
      %s15 = ssub.s32 64, 64
      %16 = vsyncadd [#allocation3], %s15
      %s18 = sshll.u32 [#allocation2], 4
      %s19 = int_to_ptr.vmem [resolvable:$true] %s18
      %21 = dma.hbm_to_vmem [thread:$0]  %s0, 64, %s19, [#allocation3]
    $region5: #{tpu_custom_call.1} parent=1 // pred_fallthru
      _
    // Predicated region
    $region6: #{tpu_custom_call.1} parent=1 // pred_check
      _
    $region7: #{tpu_custom_call.1} parent=1 // pred_check_branch
      %23 = sbr.rel (0) target = $region9
    $region8: #{tpu_custom_call.1} parent=1 // pred_region
      %s25 = ssub.s32 1024, 1024
      %26 = vsyncadd [#allocation5], %s25
      %s27 = sshll.u32 [#allocation4], 4
      %s28 = int_to_ptr.vmem [resolvable:$true] %s27
      %33 = dma.hbm_to_vmem [thread:$0]  %s1, 1024, %s28, [#allocation5], 64, 64, 4
    $region9: #{tpu_custom_call.1} parent=1 // pred_fallthru
      _
    // Predicated region
    $region10: #{tpu_custom_call.1} parent=1 // pred_check
      _
    $region11: #{tpu_custom_call.1} parent=1 // pred_check_branch
      %35 = sbr.rel (0) target = $region13
    $region12: #{tpu_custom_call.1} parent=1 // pred_region
      %s37 = ssub.s32 1024, 1024
      %38 = vsyncadd [#allocation5], %s37
      %s39 = sshll.u32 [#allocation6], 4
      %s40 = int_to_ptr.vmem [resolvable:$true] %s39
      %45 = dma.hbm_to_vmem [thread:$0]  %s2, 1024, %s40, [#allocation5], 64, 64, 4
    $region13: #{tpu_custom_call.1} parent=1 // pred_fallthru
      _
    // Predicated region
    $region14: #{tpu_custom_call.1} parent=1 // pred_check
      _
    $region15: #{tpu_custom_call.1} parent=1 // pred_check_branch
      %47 = sbr.rel (0) target = $region17
    $region16: #{tpu_custom_call.1} parent=1 // pred_region
      _
    $region17: #{tpu_custom_call.1} parent=1 // pred_fallthru
      _
    // Predicated region
    $region18: #{tpu_custom_call.1} parent=1 // pred_check
      _
    $region19: #{tpu_custom_call.1} parent=1 // pred_check_branch
      %49 = sbr.rel (0) target = $region21
    $region20: #{tpu_custom_call.1} parent=1 // pred_region
      _
    $region21: #{tpu_custom_call.1} parent=1 // pred_fallthru
      _
    // Predicated region
    $region22: #{tpu_custom_call.1} parent=1 // pred_check
      _
    $region23: #{tpu_custom_call.1} parent=1 // pred_check_branch
      %51 = sbr.rel (0) target = $region25
    $region24: #{tpu_custom_call.1} parent=1 // pred_region
      %52 = dma.done [#allocation3], 64
    $region25: #{tpu_custom_call.1} parent=1 // pred_fallthru
      _
    // Predicated region
    $region26: #{tpu_custom_call.1} parent=1 // pred_check
      _
    $region27: #{tpu_custom_call.1} parent=1 // pred_check_branch
      %54 = sbr.rel (0) target = $region29
    $region28: #{tpu_custom_call.1} parent=1 // pred_region
      %55 = dma.done [#allocation5], 1024
    $region29: #{tpu_custom_call.1} parent=1 // pred_fallthru
      _
    // Predicated region
    $region30: #{tpu_custom_call.1} parent=1 // pred_check
      _
    $region31: #{tpu_custom_call.1} parent=1 // pred_check_branch
      %57 = sbr.rel (0) target = $region33
    $region32: #{tpu_custom_call.1} parent=1 // pred_region
      %58 = dma.done [#allocation5], 1024
    $region33: #{tpu_custom_call.1} parent=1 // pred_fallthru
      _
    %v60 = vld [vmem:[#allocation2] sm:$0xf]
    %v61 = vld [vmem:[#allocation4] sm:$0xf]
    %v62 = vld [vmem:[#allocation4 + $0x4] sm:$0xf]
    %v63 = vld [vmem:[#allocation4 + $0x8] sm:$0xf]
    %v64 = vld [vmem:[#allocation4 + $0xc] sm:$0xf]
    %v65 = vld [vmem:[#allocation4 + $0x10] sm:$0xf]
    %v66 = vld [vmem:[#allocation4 + $0x14] sm:$0xf]
    %v67 = vld [vmem:[#allocation4 + $0x18] sm:$0xf]
    %v68 = vld [vmem:[#allocation4 + $0x1c] sm:$0xf]
    %v69 = vld [vmem:[#allocation4 + $0x20] sm:$0xf]
    %v70 = vld [vmem:[#allocation4 + $0x24] sm:$0xf]
    %v71 = vld [vmem:[#allocation4 + $0x28] sm:$0xf]
    %v72 = vld [vmem:[#allocation4 + $0x2c] sm:$0xf]
    %v73 = vld [vmem:[#allocation4 + $0x30] sm:$0xf]
    %v74 = vld [vmem:[#allocation4 + $0x34] sm:$0xf]
    %v75 = vld [vmem:[#allocation4 + $0x38] sm:$0xf]
    %v76 = vld [vmem:[#allocation4 + $0x3c] sm:$0xf]
    %v77 = vld [vmem:[%s4] sm:$0x1]
    %v78 = vlaneseq
    %v79 = vshrl.u32 %v78, 7
    %v80 = vsub.s32 0, %v79
    %v81 = vrot.slane %v77, %v80
    %v98 = vunpack.c.l.b16 %v61
    %v99 = vunpack.c.l.b16 %v62
    %v100 = vunpack.c.l.b16 %v63
    %v101 = vunpack.c.l.b16 %v64
    %v102 = vunpack.c.l.b16 %v65
    %v103 = vunpack.c.l.b16 %v66
    %v104 = vunpack.c.l.b16 %v67
    %v105 = vunpack.c.l.b16 %v68
    %v106 = vunpack.c.l.b16 %v69
    %v107 = vunpack.c.l.b16 %v70
    %v108 = vunpack.c.l.b16 %v71
    %v109 = vunpack.c.l.b16 %v72
    %v110 = vunpack.c.l.b16 %v73
    %v111 = vunpack.c.l.b16 %v74
    %v112 = vunpack.c.l.b16 %v75
    %v113 = vunpack.c.l.b16 %v76
    %v114 = vpack.c.b16 %v99, %v98
    %v115 = vpack.c.b16 %v101, %v100
    %v116 = vpack.c.b16 %v103, %v102
    %v117 = vpack.c.b16 %v105, %v104
    %v118 = vpack.c.b16 %v107, %v106
    %v119 = vpack.c.b16 %v109, %v108
    %v120 = vpack.c.b16 %v111, %v110
    %v121 = vpack.c.b16 %v113, %v112
    %130 = vmatprep.subr.bf16.mxu0 0
    %131 = vmatpush1.bf16.msra.mxu0 %v114
    %132 = vmatprep.subr.bf16.mxu0 0
    %133 = vmatpush1.bf16.msra.mxu0 %v115
    %134 = vmatprep.subr.bf16.mxu0 0
    %135 = vmatpush1.bf16.msra.mxu0 %v116
    %136 = vmatprep.subr.bf16.mxu0 0
    %137 = vmatpush1.bf16.msra.mxu0 %v117
    %138 = vmatprep.subr.bf16.mxu0 0
    %139 = vmatpush1.bf16.msra.mxu0 %v118
    %140 = vmatprep.subr.bf16.mxu0 0
    %141 = vmatpush1.bf16.msra.mxu0 %v119
    %142 = vmatprep.subr.bf16.mxu0 0
    %143 = vmatpush1.bf16.msra.mxu0 %v120
    %144 = vmatprep.subr.bf16.mxu0 0
    %145 = vmatpush1.bf16.msra.mxu0 %v121
    %146 = vmatprep.subr.bf16.mxu0 0
    %147 = vmatpush1.bf16.msra.mxu0 0
    %148 = vmatprep.subr.bf16.mxu0 0
    %149 = vmatpush1.bf16.msra.mxu0 0
    %150 = vmatprep.subr.bf16.mxu0 0
    %151 = vmatpush1.bf16.msra.mxu0 0
    %152 = vmatprep.subr.bf16.mxu0 0
    %153 = vmatpush1.bf16.msra.mxu0 0
    %154 = vmatprep.subr.bf16.mxu0 0
    %155 = vmatpush1.bf16.msra.mxu0 0
    %156 = vmatprep.subr.bf16.mxu0 0
    %157 = vmatpush1.bf16.msra.mxu0 0
    %158 = vmatprep.subr.bf16.mxu0 0
    %159 = vmatpush1.bf16.msra.mxu0 0
    %160 = vmatprep.subr.bf16.mxu0 0
    %161 = vmatpush1.bf16.msra.mxu0 0
    %162 = vmatprep.mubr.bf16.mxu0 0
    %163 = vmatmul.mubr.bf16.gmra.mrb[0].mxu0 %v60
    %v164 = vpop.f32.mrb[0].mxu0
    %v165 = vadd.f32 %v81, %v164
    %v166 = vpop.f32.mrb[0].mxu0
    %v167 = vpop.f32.mrb[0].mxu0
    %v168 = vpop.f32.mrb[0].mxu0
    %169 = vdwg.mxu0
    %v170 = vtanh.pop %v165
    %v171 = vpack.c.bf16 %v170, %v170
    %v172 = vld [vmem:[#allocation6] sm:$0xf]
    %v173 = vld [vmem:[#allocation6 + $0x4] sm:$0xf]
    %v174 = vld [vmem:[#allocation6 + $0x8] sm:$0xf]
    %v175 = vld [vmem:[#allocation6 + $0xc] sm:$0xf]
    %v176 = vld [vmem:[#allocation6 + $0x10] sm:$0xf]
    %v177 = vld [vmem:[#allocation6 + $0x14] sm:$0xf]
    %v178 = vld [vmem:[#allocation6 + $0x18] sm:$0xf]
    %v179 = vld [vmem:[#allocation6 + $0x1c] sm:$0xf]
    %v180 = vld [vmem:[#allocation6 + $0x20] sm:$0xf]
    %v181 = vld [vmem:[#allocation6 + $0x24] sm:$0xf]
    %v182 = vld [vmem:[#allocation6 + $0x28] sm:$0xf]
    %v183 = vld [vmem:[#allocation6 + $0x2c] sm:$0xf]
    %v184 = vld [vmem:[#allocation6 + $0x30] sm:$0xf]
    %v185 = vld [vmem:[#allocation6 + $0x34] sm:$0xf]
    %v186 = vld [vmem:[#allocation6 + $0x38] sm:$0xf]
    %v187 = vld [vmem:[#allocation6 + $0x3c] sm:$0xf]
    %v188 = vld [vmem:[%s4 + $0x1] sm:$0x1]
    %v189 = vlaneseq
    %v190 = vshrl.u32 %v189, 7
    %v191 = vsub.s32 0, %v190
    %v192 = vrot.slane %v188, %v191
    %v209 = vunpack.c.l.b16 %v172
    %v210 = vunpack.c.l.b16 %v173
    %v211 = vunpack.c.l.b16 %v174
    %v212 = vunpack.c.l.b16 %v175
    %v213 = vunpack.c.l.b16 %v176
    %v214 = vunpack.c.l.b16 %v177
    %v215 = vunpack.c.l.b16 %v178
    %v216 = vunpack.c.l.b16 %v179
    %v217 = vunpack.c.l.b16 %v180
    %v218 = vunpack.c.l.b16 %v181
    %v219 = vunpack.c.l.b16 %v182
    %v220 = vunpack.c.l.b16 %v183
    %v221 = vunpack.c.l.b16 %v184
    %v222 = vunpack.c.l.b16 %v185
    %v223 = vunpack.c.l.b16 %v186
    %v224 = vunpack.c.l.b16 %v187
    %v225 = vpack.c.b16 %v210, %v209
    %v226 = vpack.c.b16 %v212, %v211
    %v227 = vpack.c.b16 %v214, %v213
    %v228 = vpack.c.b16 %v216, %v215
    %v229 = vpack.c.b16 %v218, %v217
    %v230 = vpack.c.b16 %v220, %v219
    %v231 = vpack.c.b16 %v222, %v221
    %v232 = vpack.c.b16 %v224, %v223
    %241 = vmatprep.subr.bf16.mxu0 0
    %242 = vmatpush1.bf16.msra.mxu0 %v225
    %243 = vmatprep.subr.bf16.mxu0 0
    %244 = vmatpush1.bf16.msra.mxu0 %v226
    %245 = vmatprep.subr.bf16.mxu0 0
    %246 = vmatpush1.bf16.msra.mxu0 %v227
    %247 = vmatprep.subr.bf16.mxu0 0
    %248 = vmatpush1.bf16.msra.mxu0 %v228
    %249 = vmatprep.subr.bf16.mxu0 0
    %250 = vmatpush1.bf16.msra.mxu0 %v229
    %251 = vmatprep.subr.bf16.mxu0 0
    %252 = vmatpush1.bf16.msra.mxu0 %v230
    %253 = vmatprep.subr.bf16.mxu0 0
    %254 = vmatpush1.bf16.msra.mxu0 %v231
    %255 = vmatprep.subr.bf16.mxu0 0
    %256 = vmatpush1.bf16.msra.mxu0 %v232
    %257 = vmatprep.subr.bf16.mxu0 0
    %258 = vmatpush1.bf16.msra.mxu0 0
    %259 = vmatprep.subr.bf16.mxu0 0
    %260 = vmatpush1.bf16.msra.mxu0 0
    %261 = vmatprep.subr.bf16.mxu0 0
    %262 = vmatpush1.bf16.msra.mxu0 0
    %263 = vmatprep.subr.bf16.mxu0 0
    %264 = vmatpush1.bf16.msra.mxu0 0
    %265 = vmatprep.subr.bf16.mxu0 0
    %266 = vmatpush1.bf16.msra.mxu0 0
    %267 = vmatprep.subr.bf16.mxu0 0
    %268 = vmatpush1.bf16.msra.mxu0 0
    %269 = vmatprep.subr.bf16.mxu0 0
    %270 = vmatpush1.bf16.msra.mxu0 0
    %271 = vmatprep.subr.bf16.mxu0 0
    %272 = vmatpush1.bf16.msra.mxu0 0
    %273 = vmatprep.mubr.bf16.mxu0 0
    %274 = vmatmul.mubr.bf16.gmra.mrb[0].mxu0 %v171
    %v275 = vpop.f32.mrb[0].mxu0
    %v276 = vadd.f32 %v192, %v275
    %v277 = vpop.f32.mrb[0].mxu0
    %v278 = vpop.f32.mrb[0].mxu0
    %v279 = vpop.f32.mrb[0].mxu0
    %280 = vdwg.mxu0
    %v281 = vtanh.pop %v276
    %v282 = vld [vmem:[%s3] sm:$0x1]
    %v284 = vlaneseq
    %v285 = vshrl.u32 %v284, 7
    %v286 = vsub.s32 0, %v285
    %v287 = vrot.slane %v282, %v286
    %v289 = vmul.f32 %v281, %v287
    %290 = vadd.xlane.f32.xlu0 %v289
    %v291 = vpop.xlane.xlu0 %290
    %v292 = vld [vmem:[%s4 + $0x2] sm:$0x1]
    %v293 = vlaneseq
    %v294 = vshrl.u32 %v293, 7
    %v295 = vsub.s32 0, %v294
    %v296 = vrot.slane %v292, %v295
    %v297 = vadd.f32 %v291, %v296
    %vm298 = vcmask 7168
    %299 = vst.msk [vmem:[%s5] sm:$0xff] %vm298, %v297
    // Predicated region
    $region34: #{tpu_custom_call.1} parent=1 // pred_check
      _
    $region35: #{tpu_custom_call.1} parent=1 // pred_check_branch
      %301 = sbr.rel (0) target = $region37
    $region36: #{tpu_custom_call.1} parent=1 // pred_region
      _
    $region37: #{tpu_custom_call.1} parent=1 // pred_fallthru
      _
    // Predicated region
    $region38: #{tpu_custom_call.1} parent=1 // pred_check
      _
    $region39: #{tpu_custom_call.1} parent=1 // pred_check_branch
      %303 = sbr.rel (0) target = $region41
    $region40: #{tpu_custom_call.1} parent=1 // pred_region
      _
    $region41: #{tpu_custom_call.1} parent=1 // pred_fallthru
      _
    %304 = vsyncpa [#allocation3], 1
    %305 = vsyncpa [#allocation5], 1

</llo_original>
